<compile_context>
chip_gen: v6e
topology: v6e:2x2x1
jax: 0.10.0
libtpu: 0.0.40
codegen_flags: <defaults>
</compile_context>

<pallas_src>
import functools
import math

import jax
import jax.numpy as jnp
from jax.experimental import pallas as pl
from jax.experimental.pallas import tpu as pltpu

_MXU_DTYPE = jnp.bfloat16           # MXU-boundary dtype (f32 accumulate everywhere)
_LN_EPS = 1e-12


@functools.lru_cache(maxsize=None)
def _vmem_limit_bytes():
    """Generation-aware VMEM budget: ~3/4 of physical capacity.

    v7x: 64 MiB per-TC -> 48 MiB limit;  v5e/v6e: 128 MiB -> 96 MiB limit.
    Falls back to the conservative 48 MiB if the query is unavailable.
    """
    cap = 64 * 1024 * 1024
    try:
        cap = int(getattr(pltpu.get_tpu_info(), "vmem_capacity_bytes", cap))
    except Exception:
        pass
    return (cap // 4) * 3


def _compiler_params(n_parallel_axes):
    return pltpu.CompilerParams(
        dimension_semantics=("parallel",) * n_parallel_axes,
        vmem_limit_bytes=_vmem_limit_bytes())


def _round_up(x, m):
    return ((x + m - 1) // m) * m


def _row_tiling(m, granularity=16, max_tile=512):
    """Pick a row tile (multiple of `granularity`) and padded row count.

    Works for any m (no exact-divisibility requirement; caller pads to the
    returned row count).  Splits into >=2 grid steps whenever there is enough
    work so a "parallel" grid axis can shard across both v7x TensorCores.
    """
    mg = _round_up(m, granularity)
    tm = min(max_tile, mg)
    if mg // tm < 2 and mg >= 2 * granularity:
        tm = _round_up(mg // 2, granularity)
    return tm, _round_up(m, tm)


def _gelu(x):
    # TODO(synk): HF BERT default hidden_act is exact erf-GELU; tanh approximation used here.
    return 0.5 * x * (1.0 + jnp.tanh(0.7978845608028654 * (x + 0.044715 * x * x * x)))


def _layernorm_epilogue(y, g, b, eps):
    mean = jnp.mean(y, axis=-1, keepdims=True)
    c = y - mean
    var = jnp.mean(c * c, axis=-1, keepdims=True)
    return c * jax.lax.rsqrt(var + eps) * g + b


# ----------------------------- Pallas kernels ------------------------------

def _ln_kernel(x_ref, g_ref, b_ref, o_ref, *, eps):
    """y = LayerNorm(x) * gamma + beta (embedding LayerNorm, no residual)."""
    o_ref[...] = _layernorm_epilogue(x_ref[...], g_ref[...], b_ref[...], eps)


def layernorm(x, gamma, beta, eps=_LN_EPS):
    M, H = x.shape
    tm, Mp = _row_tiling(M, granularity=8)           # no MXU here; 8-row granularity
    xp = x if Mp == M else jnp.pad(x, ((0, Mp - M), (0, 0)))
    out = pl.pallas_call(
        functools.partial(_ln_kernel, eps=eps),
        out_shape=jax.ShapeDtypeStruct((Mp, H), jnp.float32),
        grid=(Mp // tm,),
        in_specs=[pl.BlockSpec((tm, H), lambda i: (i, 0)),
                  pl.BlockSpec((1, H), lambda i: (0, 0)),
                  pl.BlockSpec((1, H), lambda i: (0, 0))],
        out_specs=pl.BlockSpec((tm, H), lambda i: (i, 0)),
        compiler_params=_compiler_params(1),
    )(xp, gamma.reshape(1, H), beta.reshape(1, H))
    return out if Mp == M else out[:M]


def _dense_kernel(x_ref, w_ref, b_ref, o_ref, *, activation):
    """y = act(x @ W + b); bf16 weights (no cast), bf16 MXU operands, f32 accumulate."""
    y = jnp.dot(x_ref[...].astype(_MXU_DTYPE), w_ref[...],
                preferred_element_type=jnp.float32) + b_ref[...]
    if activation == "tanh":
        y = jnp.tanh(y)
    elif activation == "gelu":
        y = _gelu(y)
    o_ref[...] = y


def dense(x, w, b, activation="none"):
    M, K = x.shape
    N = w.shape[1]
    tm, Mp = _row_tiling(M, granularity=16)
    xp = x if Mp == M else jnp.pad(x, ((0, Mp - M), (0, 0)))
    out = pl.pallas_call(
        functools.partial(_dense_kernel, activation=activation),
        out_shape=jax.ShapeDtypeStruct((Mp, N), jnp.float32),
        grid=(Mp // tm,),
        in_specs=[pl.BlockSpec((tm, K), lambda i: (i, 0)),
                  pl.BlockSpec((K, N), lambda i: (0, 0)),   # bf16 weight, VMEM resident
                  pl.BlockSpec((1, N), lambda i: (0, 0))],
        out_specs=pl.BlockSpec((tm, N), lambda i: (i, 0)),
        compiler_params=_compiler_params(1),
    )(xp, w, b.reshape(1, N))
    return out if Mp == M else out[:M]


def _encoder_layer_kernel(x_ref, mask_ref,
                          wqkv_ref, bqkv_ref, wo_ref, bo_ref, g1_ref, be1_ref,
                          wi_ref, bi_ref, wo2_ref, bo2_ref, g2_ref, be2_ref,
                          o_ref, qkv_ref, ctx_ref,
                          *, num_heads, head_dim, eps):
    """One fully fused BERT encoder layer for one batch element.

    x_ref:    (1, S, H) f32 hidden states
    mask_ref: (1, 1, S) f32 additive attention mask (HF: (1-mask)*-1e4)
    weights:  bf16, biases / LN params f32
    o_ref:    (1, S, H) f32
    qkv_ref:  (S, 3H) bf16 VMEM scratch      ctx_ref: (S, H) bf16 VMEM scratch
    """
    H = num_heads * head_dim
    x = x_ref[0]                                         # (S, H) f32
    S = x.shape[0]

    # ---- fused QKV projection (1/sqrt(d) already folded into the Q columns) ----
    qkv_ref[...] = (jnp.dot(x.astype(_MXU_DTYPE), wqkv_ref[...],
                            preferred_element_type=jnp.float32)
                    + bqkv_ref[...]).astype(_MXU_DTYPE)

    # ---- multi-head attention; mask broadcast hoisted out of the head loop ----
    mask_b = jnp.broadcast_to(mask_ref[0], (S, S))       # (S, S) f32, built once
    for h in range(num_heads):                           # static unroll; lane slices
        lo = h * head_dim
        q = qkv_ref[:, lo:lo + head_dim]                 # (S, d) bf16 (pre-scaled)
        k = qkv_ref[:, H + lo:H + lo + head_dim]
        v = qkv_ref[:, 2 * H + lo:2 * H + lo + head_dim]
        s = jax.lax.dot_general(q, k, (((1,), (1,)), ((), ())),
                                preferred_element_type=jnp.float32) + mask_b
        m = jnp.max(s, axis=-1, keepdims=True)
        p = jnp.exp(s - m)                               # f32 softmax
        l = jnp.sum(p, axis=-1, keepdims=True)
        probs = (p * pl.reciprocal(l, approx=True)).astype(_MXU_DTYPE)
        # per-head store bounds live ranges (no list + concatenate at the end)
        ctx_ref[:, lo:lo + head_dim] = jnp.dot(
            probs, v, preferred_element_type=jnp.float32).astype(_MXU_DTYPE)
    # TODO(synk): for long sequences switch to a flash-style (q-tile, kv-tile)
    # online-softmax loop instead of materializing (S, S) scores per head, and
    # pack >=2 heads per MXU pass (head_dim << 256-wide MXU on v6e/v7x).

    # ---- attention output projection + bias + residual + LayerNorm ----
    y1 = (jnp.dot(ctx_ref[...], wo_ref[...], preferred_element_type=jnp.float32)
          + bo_ref[...] + x)
    y1 = _layernorm_epilogue(y1, g1_ref[...], be1_ref[...], eps)

    # ---- FFN: GELU dense -> down-projection -> bias -> residual -> LayerNorm ----
    hdn = _gelu(jnp.dot(y1.astype(_MXU_DTYPE), wi_ref[...],
                        preferred_element_type=jnp.float32) + bi_ref[...])
    y2 = (jnp.dot(hdn.astype(_MXU_DTYPE), wo2_ref[...],
                  preferred_element_type=jnp.float32) + bo2_ref[...] + y1)
    o_ref[0] = _layernorm_epilogue(y2, g2_ref[...], be2_ref[...], eps)


def encoder_layer(x, mask_add, layer, num_heads, head_dim, eps=_LN_EPS):
    B, S, H = x.shape
    threeH = 3 * H
    I = layer["wi"].shape[1]
    return pl.pallas_call(
        functools.partial(_encoder_layer_kernel, num_heads=num_heads,
                          head_dim=head_dim, eps=eps),
        out_shape=jax.ShapeDtypeStruct((B, S, H), jnp.float32),
        grid=(B,),                                        # batch shards across TCs
        in_specs=[
            pl.BlockSpec((1, S, H), lambda b: (b, 0, 0)),
            pl.BlockSpec((1, 1, S), lambda b: (b, 0, 0)),
            pl.BlockSpec((H, threeH), lambda b: (0, 0)),  # bf16 weights: constant
            pl.BlockSpec((1, threeH), lambda b: (0, 0)),  # index maps -> resident
            pl.BlockSpec((H, H), lambda b: (0, 0)),
            pl.BlockSpec((1, H), lambda b: (0, 0)),
            pl.BlockSpec((1, H), lambda b: (0, 0)),
            pl.BlockSpec((1, H), lambda b: (0, 0)),
            pl.BlockSpec((H, I), lambda b: (0, 0)),
            pl.BlockSpec((1, I), lambda b: (0, 0)),
            pl.BlockSpec((I, H), lambda b: (0, 0)),
            pl.BlockSpec((1, H), lambda b: (0, 0)),
            pl.BlockSpec((1, H), lambda b: (0, 0)),
            pl.BlockSpec((1, H), lambda b: (0, 0)),
        ],
        out_specs=pl.BlockSpec((1, S, H), lambda b: (b, 0, 0)),
        scratch_shapes=[pltpu.VMEM((S, threeH), _MXU_DTYPE),   # fused qkv
                        pltpu.VMEM((S, H), _MXU_DTYPE)],       # merged heads ctx
        compiler_params=_compiler_params(1),
    )(x, mask_add,
      layer["w_qkv"], layer["b_qkv"].reshape(1, threeH),
      layer["wo"], layer["bo"].reshape(1, H),
      layer["ln1_g"].reshape(1, H), layer["ln1_b"].reshape(1, H),
      layer["wi"], layer["bi"].reshape(1, I),
      layer["wo2"], layer["bo2"].reshape(1, H),
      layer["ln2_g"].reshape(1, H), layer["ln2_b"].reshape(1, H))


# ------------------------------ model (glue) --------------------------------

def init_params(key, *, vocab=100, hidden=32, num_layers=2, heads=4,
                intermediate=64, max_pos=16, type_vocab=2, code_length=16):
    keys = iter(jax.random.split(key, 8 + num_layers * 8))

    def nrm(shape, scale=0.02):
        return (scale * jax.random.normal(next(keys), shape)).astype(jnp.float32)

    head_dim = hidden // heads
    qk_scale = 1.0 / math.sqrt(head_dim)

    params = {
        "cfg": dict(hidden=hidden, heads=heads, code_length=code_length),
        "word_emb": nrm((vocab, hidden)),
        "pos_emb": nrm((max_pos, hidden)),
        "type_emb": nrm((type_vocab, hidden)),
        "emb_ln_g": jnp.ones((hidden,), jnp.float32),
        "emb_ln_b": jnp.zeros((hidden,), jnp.float32),
        "fc_w": nrm((hidden, code_length)).astype(_MXU_DTYPE),   # bf16 in HBM
        "fc_b": jnp.zeros((code_length,), jnp.float32),
        "layers": [],
    }
    for _ in range(num_layers):
        wq, wk, wv = (nrm((hidden, hidden)), nrm((hidden, hidden)),
                      nrm((hidden, hidden)))
        bq = jnp.zeros((hidden,), jnp.float32)
        bk = jnp.zeros((hidden,), jnp.float32)
        bv = jnp.zeros((hidden,), jnp.float32)
        # 1/sqrt(head_dim) folded into the Q columns (and Q bias) of the fused
        # QKV weight so the attention kernel never multiplies by the scale.
        w_qkv = jnp.concatenate([wq * qk_scale, wk, wv], axis=1)
        b_qkv = jnp.concatenate([bq * qk_scale, bk, bv], axis=0)
        params["layers"].append({
            "w_qkv": w_qkv.astype(_MXU_DTYPE),                   # bf16 (H, 3H)
            "b_qkv": b_qkv,
            "wo": nrm((hidden, hidden)).astype(_MXU_DTYPE),
            "bo": jnp.zeros((hidden,), jnp.float32),
            "ln1_g": jnp.ones((hidden,), jnp.float32),
            "ln1_b": jnp.zeros((hidden,), jnp.float32),
            "wi": nrm((hidden, intermediate)).astype(_MXU_DTYPE),
            "bi": jnp.zeros((intermediate,), jnp.float32),
            "wo2": nrm((intermediate, hidden)).astype(_MXU_DTYPE),
            "bo2": jnp.zeros((hidden,), jnp.float32),
            "ln2_g": jnp.ones((hidden,), jnp.float32),
            "ln2_b": jnp.zeros((hidden,), jnp.float32),
        })
    return params


def bert_text_net_forward(params, tokens, segments, input_masks):
    """Equivalent of BertTextNet.forward: BERT encoder -> [CLS] -> fc -> tanh."""
    B, S = tokens.shape
    H = params["cfg"]["hidden"]
    nH = params["cfg"]["heads"]
    d = H // nH

    # --- embeddings (gathers are JAX glue; LayerNorm is a kernel) ---
    positions = jnp.arange(S, dtype=jnp.int32)
    emb = (params["word_emb"][tokens]
           + params["pos_emb"][positions][None, :, :]
           + params["type_emb"][segments]).astype(jnp.float32)
    x = layernorm(emb.reshape(B * S, H), params["emb_ln_g"], params["emb_ln_b"])
    x = x.reshape(B, S, H)

    # --- HF additive attention mask: (1 - mask) * -10000, shape (B, 1, S) ---
    mask_add = ((1.0 - input_masks.astype(jnp.float32)) * -10000.0).reshape(B, 1, S)

    # --- one fused pallas_call per encoder layer ---
    for layer in params["layers"]:
        x = encoder_layer(x, mask_add, layer, nH, d)

    # [CLS] pooling reads only B rows, then fused fc + tanh
    cls = x[:, 0, :]                                              # (B, H)
    features = dense(cls, params["fc_w"], params["fc_b"], activation="tanh")
    return features


# ---------------------------------- main -------------------------------------

if __name__ == "__main__":
    key = jax.random.PRNGKey(0)
    pkey, tkey = jax.random.split(key)

    B, S = 2, 8
    params = init_params(pkey, vocab=100, hidden=32, num_layers=2, heads=4,
                         intermediate=64, max_pos=16, type_vocab=2,
                         code_length=16)

    tokens = jax.random.randint(tkey, (B, S), 0, 100, dtype=jnp.int32)
    segments = jnp.zeros((B, S), dtype=jnp.int32).at[:, S // 2:].set(1)
    input_masks = jnp.array([[1.0] * S,
                             [1.0] * (S - 2) + [0.0] * 2], dtype=jnp.float32)

    feats = bert_text_net_forward(params, tokens, segments, input_masks)
    feats = jax.block_until_ready(feats)
    assert feats.shape == (B, 16) and feats.dtype == jnp.float32
    print("KERNEL_OK")
</pallas_src>

<mosaic_0001>
module attributes {stable_mosaic.version = 11 : i64} {
  func.func @_ln_kernel(%arg0: i32, %arg1: memref<8x32xf32, #tpu.memory_space<vmem>>, %arg2: memref<1x32xf32, #tpu.memory_space<vmem>>, %arg3: memref<1x32xf32, #tpu.memory_space<vmem>>, %arg4: memref<8x32xf32, #tpu.memory_space<vmem>>) attributes {dimension_semantics = [#tpu.dimension_semantics<parallel>], iteration_bounds = array<i64: 2>, scalar_prefetch = 0 : i64, scratch_operands = 0 : i64, tpu.core_type = #tpu.core_type<tc>, window_params = [{transform_indices = @transform_0, window_bounds = array<i64: 8, 32>}, {pipeline_mode = #tpu.pipeline_mode<synchronous>, transform_indices = @transform_1, window_bounds = array<i64: 1, 32>}, {pipeline_mode = #tpu.pipeline_mode<synchronous>, transform_indices = @transform_2, window_bounds = array<i64: 1, 32>}, {transform_indices = @transform_3, window_bounds = array<i64: 8, 32>}]} {
    %c0 = arith.constant 0 : index
    %c0_0 = arith.constant 0 : index
    %0 = vector.load %arg1[%c0, %c0_0] : memref<8x32xf32, #tpu.memory_space<vmem>>, vector<8x32xf32>
    %c0_1 = arith.constant 0 : index
    %c0_2 = arith.constant 0 : index
    %1 = vector.load %arg2[%c0_1, %c0_2] : memref<1x32xf32, #tpu.memory_space<vmem>>, vector<1x32xf32>
    %c0_3 = arith.constant 0 : index
    %c0_4 = arith.constant 0 : index
    %2 = vector.load %arg3[%c0_3, %c0_4] : memref<1x32xf32, #tpu.memory_space<vmem>>, vector<1x32xf32>
    %cst = arith.constant dense<0.000000e+00> : vector<8xf32>
    %3 = vector.multi_reduction <add>, %0, %cst [1] : vector<8x32xf32> to vector<8xf32>
    %4 = vector.shape_cast %3 : vector<8xf32> to vector<8x1xf32>
    %cst_5 = arith.constant 3.200000e+01 : f32
    %5 = vector.broadcast %cst_5 : f32 to vector<8x1xf32>
    %6 = arith.divf %4, %5 : vector<8x1xf32>
    %7 = vector.broadcast %6 : vector<8x1xf32> to vector<8x32xf32>
    %8 = arith.subf %0, %7 : vector<8x32xf32>
    %9 = arith.mulf %8, %8 : vector<8x32xf32>
    %cst_6 = arith.constant dense<0.000000e+00> : vector<8xf32>
    %10 = vector.multi_reduction <add>, %9, %cst_6 [1] : vector<8x32xf32> to vector<8xf32>
    %11 = vector.shape_cast %10 : vector<8xf32> to vector<8x1xf32>
    %cst_7 = arith.constant 3.200000e+01 : f32
    %12 = vector.broadcast %cst_7 : f32 to vector<8x1xf32>
    %13 = arith.divf %11, %12 : vector<8x1xf32>
    %cst_8 = arith.constant 9.99999996E-13 : f32
    %14 = vector.broadcast %cst_8 : f32 to vector<8x1xf32>
    %15 = arith.addf %13, %14 : vector<8x1xf32>
    %16 = math.rsqrt %15 : vector<8x1xf32>
    %17 = vector.broadcast %16 : vector<8x1xf32> to vector<8x32xf32>
    %18 = arith.mulf %8, %17 : vector<8x32xf32>
    %19 = vector.broadcast %1 : vector<1x32xf32> to vector<8x32xf32>
    %20 = arith.mulf %18, %19 : vector<8x32xf32>
    %21 = vector.broadcast %2 : vector<1x32xf32> to vector<8x32xf32>
    %22 = arith.addf %20, %21 : vector<8x32xf32>
    %c0_9 = arith.constant 0 : index
    %c0_10 = arith.constant 0 : index
    %23 = vector.load %arg4[%c0_9, %c0_10] : memref<8x32xf32, #tpu.memory_space<vmem>>, vector<8x32xf32>
    tpu.vector_store %arg4[%c0_9, %c0_10], %22 {strides = array<i32>} : memref<8x32xf32, #tpu.memory_space<vmem>>, vector<8x32xf32>,
    return
  }
  func.func @transform_0(%arg0: i32) -> (i32, i32) {
    %c0_i32 = arith.constant 0 : i32
    %c0_i32_0 = arith.constant 0 : i32
    return %arg0, %c0_i32 : i32, i32
  }
  func.func @transform_1(%arg0: i32) -> (i32, i32) {
    %c0_i32 = arith.constant 0 : i32
    %c0_i32_0 = arith.constant 0 : i32
    %c0_i32_1 = arith.constant 0 : i32
    return %c0_i32, %c0_i32_0 : i32, i32
  }
  func.func @transform_2(%arg0: i32) -> (i32, i32) {
    %c0_i32 = arith.constant 0 : i32
    %c0_i32_0 = arith.constant 0 : i32
    %c0_i32_1 = arith.constant 0 : i32
    return %c0_i32, %c0_i32_0 : i32, i32
  }
  func.func @transform_3(%arg0: i32) -> (i32, i32) {
    %c0_i32 = arith.constant 0 : i32
    %c0_i32_0 = arith.constant 0 : i32
    return %arg0, %c0_i32 : i32, i32
  }
}

</mosaic_0001>

<llo_original>
// kernel: tpu_custom_call.1
$region0: #{tpu_custom_call.1}
  #allocation0 [shape = 'u32[]', space=smem, size = 0x4, offset = 0x4, fixed_abs, tag = 'smem constant byte address 0x4 - core index']
  #allocation1 [shape = 'u32[144,128]{1,0:T(1,128)}', space=vmem, size = 0x12000, scoped, tag = 'internal scratch']
  %s0 = inlined_call_operand.hbm [shape: f32[16,32], index: 0, kind: input, shape index: {}]
  %s1 = inlined_call_operand.vmem [shape: f32[1,32], index: 1, kind: input, shape index: {}]
  %s2 = inlined_call_operand.vmem [shape: f32[1,32], index: 2, kind: input, shape index: {}]
  %s3 = inlined_call_operand.hbm [shape: f32[16,32], index: 3, kind: output, shape index: {}]
  %s4 = sld [smem:[#allocation0]]
  $region49: #{tpu_custom_call.1} parent=0
    _
  %s6 = ssub.s32 1, %s4
  %s7 = scalar_select 0, %s6, %s4
  $region1: #{tpu_custom_call.1} parent=0
    #allocation2 [shape = 'u8[8192]{0}', space=vmem, size = 0x2000, scoped, tag = 'input window, operand 0']
    #allocation3 [shape = 's32[2]{0}', space=sflag, size = 0x8, scoped, tag = 'scoped memory for tpu_custom_call.1']
    #allocation4 [shape = 's32[2]{0}', space=sflag, size = 0x8, scoped, tag = 'scoped memory for tpu_custom_call.1']
    #allocation5 [shape = 'u8[8192]{0}', space=vmem, size = 0x2000, scoped, tag = 'output window, operand 0']
    %8 = vsyncpa [#allocation3], 0
    %s9 = scalar_lea.sflag [#allocation3], 1
    %10 = vsyncpa %s9, 0
    %11 = vsyncpa [#allocation4], 0
    %s12 = scalar_lea.sflag [#allocation4], 1
    %13 = vsyncpa %s12, 0
    loop: start=0, step=1, limit=4
    $region2: #{tpu_custom_call.1} parent=1 // loop_pre_header
      _
    $region3: #{tpu_custom_call.1} parent=1 // loop_header
      %s15 = sphi 0, %s19
      %p16 = scmp.ge.s32.totalorder %s15, 4
      %s25 = sphi 0, %s27
      %s28 = sphi 0, %s25
      %s29 = sphi 0, %s28
      %s45 = sphi 0, %s29
      %s49 = sphi 0, %s49
      %s51 = sphi 0, %s49
      %s52 = sphi 0, %s51
      %s66 = sphi 0, %s52
      %s70 = sphi 0, %s70
      %s72 = sphi 0, %s70
      %s73 = sphi 0, %s72
      %s87 = sphi 0, %s73
      %s93 = sphi 0, %s95
      %s96 = sphi 0, %s93
      %s97 = sphi 0, %s96
      %s113 = sphi 0, %s97
    $region4: #{tpu_custom_call.1} parent=1 // loop_header_branch
      %18 = sbr.rel (%p16) target = $region8
    $region5: #{tpu_custom_call.1} parent=1 // loop_body
      %s20 = ssub.s32 %s15, 1
      %s21 = ssub.s32 %s15, 2
      %s22 = sadd.s32 %s15, 1
      %s23 = ssub.s32 %s15, %s22
      %p24 = scmp.eq.s32.totalorder %s23, 0
      %s26 = sadd.s32 %s25, 1
      %s27 = scalar_select %p24, %s25, %s26
      %p30 = pneg %p24
      %p31 = scmp.eq.s32.totalorder %s15, 1
      %p32 = por %p30, %p31
      %p33 = scmp.ne.s32.totalorder %s25, %s28
      %p34 = scmp.eq.s32.totalorder %s15, 0
      %p35 = por %p33, %p34
      %p36 = scmp.ne.s32.totalorder %s25, %s28
      %p37 = scmp.eq.s32.totalorder %s20, 1
      %p38 = por %p36, %p37
      %p39 = scmp.ne.s32.totalorder %s28, %s29
      %p40 = scmp.eq.s32.totalorder %s20, 0
      %p41 = por %p39, %p40
      %p42 = scmp.ne.s32.totalorder %s28, %s29
      %p43 = scmp.eq.s32.totalorder %s21, 1
      %p44 = por %p42, %p43
      %p46 = scmp.ne.s32.totalorder %s29, %s45
      %p47 = scmp.eq.s32.totalorder %s21, 0
      %p48 = por %p46, %p47
      %s50 = sadd.s32 %s49, 1
      %p53 = scmp.eq.s32.totalorder %s15, 1
      %p54 = scmp.ne.s32.totalorder %s49, %s51
      %p55 = scmp.eq.s32.totalorder %s15, 0
      %p56 = por %p54, %p55
      %p57 = scmp.ne.s32.totalorder %s49, %s51
      %p58 = scmp.eq.s32.totalorder %s20, 1
      %p59 = por %p57, %p58
      %p60 = scmp.ne.s32.totalorder %s51, %s52
      %p61 = scmp.eq.s32.totalorder %s20, 0
      %p62 = por %p60, %p61
      %p63 = scmp.ne.s32.totalorder %s51, %s52
      %p64 = scmp.eq.s32.totalorder %s21, 1
      %p65 = por %p63, %p64
      %p67 = scmp.ne.s32.totalorder %s52, %s66
      %p68 = scmp.eq.s32.totalorder %s21, 0
      %p69 = por %p67, %p68
      %s71 = sadd.s32 %s70, 1
      %p74 = scmp.eq.s32.totalorder %s15, 1
      %p75 = scmp.ne.s32.totalorder %s70, %s72
      %p76 = scmp.eq.s32.totalorder %s15, 0
      %p77 = por %p75, %p76
      %p78 = scmp.ne.s32.totalorder %s70, %s72
      %p79 = scmp.eq.s32.totalorder %s20, 1
      %p80 = por %p78, %p79
      %p81 = scmp.ne.s32.totalorder %s72, %s73
      %p82 = scmp.eq.s32.totalorder %s20, 0
      %p83 = por %p81, %p82
      %p84 = scmp.ne.s32.totalorder %s72, %s73
      %p85 = scmp.eq.s32.totalorder %s21, 1
      %p86 = por %p84, %p85
      %p88 = scmp.ne.s32.totalorder %s73, %s87
      %p89 = scmp.eq.s32.totalorder %s21, 0
      %p90 = por %p88, %p89
      %s91 = ssub.s32 %s15, %s22
      %p92 = scmp.eq.s32.totalorder %s91, 0
      %s94 = sadd.s32 %s93, 1
      %s95 = scalar_select %p92, %s93, %s94
      %p98 = pneg %p92
      %p99 = scmp.eq.s32.totalorder %s15, 1
      %p100 = por %p98, %p99
      %p101 = scmp.ne.s32.totalorder %s93, %s96
      %p102 = scmp.eq.s32.totalorder %s15, 0
      %p103 = por %p101, %p102
      %p104 = scmp.ne.s32.totalorder %s93, %s96
      %p105 = scmp.eq.s32.totalorder %s20, 1
      %p106 = por %p104, %p105
      %p107 = scmp.ne.s32.totalorder %s96, %s97
      %p108 = scmp.eq.s32.totalorder %s20, 0
      %p109 = por %p107, %p108
      %p110 = scmp.ne.s32.totalorder %s96, %s97
      %p111 = scmp.eq.s32.totalorder %s21, 1
      %p112 = por %p110, %p111
      %p114 = scmp.ne.s32.totalorder %s97, %s113
      %p115 = scmp.eq.s32.totalorder %s21, 0
      %p116 = por %p114, %p115
      %p117 = scmp.le.s32.totalorder 1, %s15
      %p118 = scmp.lt.s32.totalorder %s15, 3
      %p119 = pnand %p117, %p118
      %p120 = pneg %p119
      // Predicated region
      $region9: #{tpu_custom_call.1} parent=5 // pred_check
        _
      $region10: #{tpu_custom_call.1} parent=5 // pred_check_branch
        %122 = sbr.rel (%p119) target = $region12
      $region11: #{tpu_custom_call.1} parent=5 // pred_region
        %s123 = ssub.s32 %s15, 1
        // Predicated region
        $region13: #{tpu_custom_call.1} parent=11 // pred_check
          %p124 = pneg %p62
        $region14: #{tpu_custom_call.1} parent=11 // pred_check_branch
          %126 = sbr.rel (%p124) target = $region16
        $region15: #{tpu_custom_call.1} parent=11 // pred_region
          _
        $region16: #{tpu_custom_call.1} parent=11 // pred_fallthru
          _
        // Predicated region
        $region17: #{tpu_custom_call.1} parent=11 // pred_check
          %p127 = pneg %p83
        $region18: #{tpu_custom_call.1} parent=11 // pred_check_branch
          %129 = sbr.rel (%p127) target = $region20
        $region19: #{tpu_custom_call.1} parent=11 // pred_region
          _
        $region20: #{tpu_custom_call.1} parent=11 // pred_fallthru
          _
      $region12: #{tpu_custom_call.1} parent=5 // pred_fallthru
        _
      %p130 = scmp.lt.s32.totalorder %s15, 2
      // Predicated region
      $region21: #{tpu_custom_call.1} parent=5 // pred_check
        %p131 = pneg %p130
      $region22: #{tpu_custom_call.1} parent=5 // pred_check_branch
        %133 = sbr.rel (%p131) target = $region24
      $region23: #{tpu_custom_call.1} parent=5 // pred_region
        // Predicated region
        $region25: #{tpu_custom_call.1} parent=23 // pred_check
          %p134 = pneg %p35
        $region26: #{tpu_custom_call.1} parent=23 // pred_check_branch
          %136 = sbr.rel (%p134) target = $region28
        $region27: #{tpu_custom_call.1} parent=23 // pred_region
          %s137 = sand.u32 %s25, 1
          %s138 = scalar_lea.sflag [#allocation3], %s137
          %s139 = sand.u32 %s25, 1
          %s140 = smul.addr %s139, 8
          %s141 = scalar_lea.vmem [#allocation2], %s140
          %s143 = ssub.s32 128, 128
          %144 = vsyncadd %s138, %s143
          %s145 = smul.addr %s15, 128
          %s146 = scalar_lea.hbm %s0, %s145
          %s148 = sshll.u32 %s141, 4
          %s149 = int_to_ptr.vmem [resolvable:$true] %s148
          %151 = dma.hbm_to_vmem [thread:$0]  %s146, 128, %s149, %s138
        $region28: #{tpu_custom_call.1} parent=23 // pred_fallthru
          _
      $region24: #{tpu_custom_call.1} parent=5 // pred_fallthru
        _
      %p152 = scmp.le.s32.totalorder 1, %s15
      %p153 = scmp.lt.s32.totalorder %s15, 3
      %p154 = pnand %p152, %p153
      %p155 = pneg %p154
      // Predicated region
      $region29: #{tpu_custom_call.1} parent=5 // pred_check
        _
      $region30: #{tpu_custom_call.1} parent=5 // pred_check_branch
        %157 = sbr.rel (%p154) target = $region32
      $region31: #{tpu_custom_call.1} parent=5 // pred_region
        %s158 = ssub.s32 %s15, 1
        %s159 = sand.u32 %s28, 1
        %s160 = scalar_lea.sflag [#allocation3], %s159
        %s161 = sand.u32 %s28, 1
        %s162 = smul.addr %s161, 8
        %s163 = scalar_lea.vmem [#allocation2], %s162
        // Predicated region
        $region33: #{tpu_custom_call.1} parent=31 // pred_check
          %p164 = pneg %p41
        $region34: #{tpu_custom_call.1} parent=31 // pred_check_branch
          %166 = sbr.rel (%p164) target = $region36
        $region35: #{tpu_custom_call.1} parent=31 // pred_region
          %167 = dma.done %s160, 128
        $region36: #{tpu_custom_call.1} parent=31 // pred_fallthru
          _
        %s168 = sand.u32 %s28, 1
        %s169 = scalar_lea.sflag [#allocation3], %s168
        %s170 = sand.u32 %s28, 1
        %s171 = smul.addr %s170, 8
        %s172 = scalar_lea.vmem [#allocation2], %s171
        %p173 = pneg %p41
        %p174 = pneg %p38
        %p175 = pneg %p62
        %p176 = pneg %p59
        %p177 = pneg %p83
        %p178 = pneg %p80
        %p179 = pneg %p109
        %p180 = pneg %p106
        %s181 = sand.u32 %s96, 1
        %s182 = scalar_lea.sflag [#allocation4], %s181
        %s183 = sand.u32 %s96, 1
        %s184 = smul.addr %s183, 8
        %s185 = scalar_lea.vmem [#allocation5], %s184
        %v186 = vld [vmem:[%s163] sm:$0xff]
        %v187 = vld [vmem:[%s1] sm:$0x1]
        %v188 = vld [vmem:[%s2] sm:$0x1]
        %vm189 = vcmask 261120
        %v190 = vsel %vm189, %v186, 0.0
        %191 = vadd.xlane.f32.xlu0 %v190
        %v192 = vpop.xlane.xlu0 %191
        %v193 = vrcp.pop 32.0
        %v194 = vmul.f32 %v192, %v193
        %v195 = vsub.f32 %v186, %v194
        %v196 = vmul.f32 %v195, %v195
        %v197 = vsel %vm189, %v196, 0.0
        %198 = vadd.xlane.f32.xlu0 %v197
        %v199 = vpop.xlane.xlu0 %198
        %v200 = vmul.f32 %v199, %v193
        %v201 = vadd.f32 %v200, 1e-12
        %v202 = vrsqrt.pop %v201
        %v203 = vmul.f32 %v195, %v202
        %v205 = vlaneseq
        %v206 = vshrl.u32 %v205, 7
        %v207 = vsub.s32 0, %v206
        %v208 = vrot.slane %v187, %v207
        %v210 = vmul.f32 %v203, %v208
        %v212 = vlaneseq
        %v213 = vshrl.u32 %v212, 7
        %v214 = vsub.s32 0, %v213
        %v215 = vrot.slane %v188, %v214
        %v217 = vadd.f32 %v210, %v215
        %218 = vst.msk [vmem:[%s185] sm:$0xff] %vm189, %v217
        %s219 = sand.u32 %s96, 1
        %s220 = scalar_lea.sflag [#allocation4], %s219
        %s221 = sand.u32 %s96, 1
        %s222 = smul.addr %s221, 8
        %s223 = scalar_lea.vmem [#allocation5], %s222
        // Predicated region
        $region37: #{tpu_custom_call.1} parent=31 // pred_check
          %p224 = pneg %p106
        $region38: #{tpu_custom_call.1} parent=31 // pred_check_branch
          %226 = sbr.rel (%p224) target = $region40
        $region39: #{tpu_custom_call.1} parent=31 // pred_region
          %s228 = ssub.s32 128, 128
          %229 = vsyncadd %s220, %s228
          %s230 = smul.addr %s20, 128
          %s231 = scalar_lea.hbm %s3, %s230
          %s233 = sshll.u32 %s223, 4
          %s234 = int_to_ptr.vmem [resolvable:$true] %s233
          %236 = dma.vmem_to_hbm [thread:$0]  %s234, 128, %s231, %s220
        $region40: #{tpu_custom_call.1} parent=31 // pred_fallthru
          _
      $region32: #{tpu_custom_call.1} parent=5 // pred_fallthru
        _
      %p237 = scmp.le.s32.totalorder 2, %s15
      // Predicated region
      $region41: #{tpu_custom_call.1} parent=5 // pred_check
        %p238 = pneg %p237
      $region42: #{tpu_custom_call.1} parent=5 // pred_check_branch
        %240 = sbr.rel (%p238) target = $region44
      $region43: #{tpu_custom_call.1} parent=5 // pred_region
        %s241 = ssub.s32 %s15, 2
        // Predicated region
        $region45: #{tpu_custom_call.1} parent=43 // pred_check
          %p242 = pneg %p112
        $region46: #{tpu_custom_call.1} parent=43 // pred_check_branch
          %244 = sbr.rel (%p242) target = $region48
        $region47: #{tpu_custom_call.1} parent=43 // pred_region
          %s245 = sand.u32 %s97, 1
          %s246 = scalar_lea.sflag [#allocation4], %s245
          %s247 = sand.u32 %s97, 1
          %s248 = smul.addr %s247, 8
          %s249 = scalar_lea.vmem [#allocation5], %s248
          %250 = dma.done %s246, 128
        $region48: #{tpu_custom_call.1} parent=43 // pred_fallthru
          _
      $region44: #{tpu_custom_call.1} parent=5 // pred_fallthru
        _
    $region6: #{tpu_custom_call.1} parent=1 // loop_footer
      %s19 = sadd.s32 1, %s15
    $region7: #{tpu_custom_call.1} parent=1 // loop_footer_branch
      %14 = sbr.rel target = $region3
    $region8: #{tpu_custom_call.1} parent=1 // loop_exit
      _
    %251 = vsyncpa [#allocation3], 1
    %s252 = scalar_lea.sflag [#allocation3], 1
    %253 = vsyncpa %s252, 1
    %254 = vsyncpa [#allocation4], 1
    %s255 = scalar_lea.sflag [#allocation4], 1
    %256 = vsyncpa %s255, 1

</llo_original>
